<compile_context>
chip_gen: v7x
topology: tpu7x:2x2x1
jax: 0.10.0
libtpu: 0.0.40
codegen_flags: <defaults>
</compile_context>

<pallas_src>
import math

import jax
import jax.numpy as jnp
from jax.experimental import pallas as pl
from jax.experimental.pallas import tpu as pltpu

BN_EPS = 1e-5


def _mlp_kernel(xp_ref, w1_ref, b1_ref, w2_ref, b2_ref, w3_ref, b3_ref, o_ref):
    xp = xp_ref[...]                                          # (rt, p*F) lane-dense
    # fused fc1+bn1 (block-diagonal), relu1 (dropout1 == identity in eval)
    h1 = jnp.dot(xp, w1_ref[...], preferred_element_type=jnp.float32)
    h1 = jnp.maximum(h1 + b1_ref[...], 0.0)                   # (rt, p*8)
    # fused fc2+bn2, relu2 (dropout2 == identity)
    h2 = jnp.dot(h1, w2_ref[...], preferred_element_type=jnp.float32)
    h2 = jnp.maximum(h2 + b2_ref[...], 0.0)                   # (rt, p*4)
    # out_layer
    o_ref[...] = (jnp.dot(h2, w3_ref[...], preferred_element_type=jnp.float32)
                  + b3_ref[...])                               # (rt, p)


def _fold_bn(w, b, gamma, beta, mean, var):
    """Fold eval-mode BatchNorm1d into the preceding Linear (x @ W + b layout)."""
    scale = gamma * jax.lax.rsqrt(var + BN_EPS)                # (1, out)
    return w * scale, (b - mean) * scale + beta                # (in,out), (1,out)


def nn_forward(x, params, *, block_b=65536):
    """x: (B, F) float32; params from init_params. Returns (B, 1) float32."""
    B, F = x.shape

    # ---- wrapper-side BN folding (zero numerical change in eval mode) ----
    w1f, b1f = _fold_bn(params["w1"], params["b1"], params["g1"], params["be1"],
                        params["m1"], params["v1"])            # (F,8), (1,8)
    w2f, b2f = _fold_bn(params["w2"], params["b2"], params["g2"], params["be2"],
                        params["m2"], params["v2"])            # (8,4), (1,4)
    w3, b3 = params["w3"], params["b3"]                        # (4,1), (1,1)

    # ---- lane-dense packing: p batch rows per 128-lane-aligned packed row ----
    p = 128 // math.gcd(F, 128)
    B0 = (B // p) * p                                          # rows handled by kernel
    tail = B - B0                                              # < p leftover rows

    outs = []
    if B0 > 0:
        eye = jnp.eye(p, dtype=jnp.float32)
        w1b = jnp.kron(eye, w1f)                               # (p*F, p*8) block-diag
        w2b = jnp.kron(eye, w2f)                               # (p*8, p*4)
        w3b = jnp.kron(eye, w3)                                # (p*4, p)
        b1b = jnp.tile(b1f, (1, p))                            # (1, p*8)
        b2b = jnp.tile(b2f, (1, p))                            # (1, p*4)
        b3b = jnp.tile(b3, (1, p))                             # (1, p)

        xp = x[:B0].reshape(B0 // p, p * F)                    # free reshape when B0 == B
        rows = B0 // p                                         # packed rows
        fpk = p * F                                            # minor dim, multiple of 128

        # ---- tile selection: large lane-dense tiles, >=2 grid steps, bounded VMEM ----
        if rows <= 8:
            rt = rows                                          # single block == full array
        else:
            desired = max(8, (max(block_b, p) // p // 8) * 8)
            half = pl.cdiv(pl.cdiv(rows, 2), 8) * 8            # >=2 steps (v7x megacore)
            vmem_cap = max(8, ((4 * 1024 * 1024) // (fpk * 4) // 8) * 8)  # ~4 MiB x tile
            rt = max(8, min(desired, half, vmem_cap))
        grid = (pl.cdiv(rows, rt),)

        const = lambda i: (0, 0)   # weights: same block every step -> VMEM-resident
        cost = pl.CostEstimate(
            flops=2 * B0 * (F * 8 + 8 * 4 + 4 * 1),
            transcendentals=0,
            bytes_accessed=int(B0 * F * 4 + B0 * 4
                               + 4 * (p * F * p * 8 + p * 8 * p * 4 + p * 4 * p
                                      + p * 8 + p * 4 + p)),
        )

        out_main = pl.pallas_call(
            _mlp_kernel,
            out_shape=jax.ShapeDtypeStruct((rows, p), jnp.float32),
            grid=grid,
            in_specs=[
                pl.BlockSpec((rt, fpk), lambda i: (i, 0)),     # packed x tile (pipelined)
                pl.BlockSpec(w1b.shape, const),
                pl.BlockSpec(b1b.shape, const),
                pl.BlockSpec(w2b.shape, const),
                pl.BlockSpec(b2b.shape, const),
                pl.BlockSpec(w3b.shape, const),
                pl.BlockSpec(b3b.shape, const),
            ],
            out_specs=pl.BlockSpec((rt, p), lambda i: (i, 0)),
            compiler_params=pltpu.CompilerParams(
                dimension_semantics=("parallel",),
                vmem_limit_bytes=40 * 1024 * 1024,             # raise v5e's 16 MiB default
            ),
            cost_estimate=cost,
        )(xp, w1b, b1b, w2b, b2b, w3b, b3b)
        outs.append(out_main.reshape(B0, 1))                   # free reshape

    if tail > 0:
        # < p leftover rows: tiny pure-JAX epilogue using the same fused weights.
        xt = x[B0:]
        h = jnp.maximum(xt @ w1f + b1f, 0.0)
        h = jnp.maximum(h @ w2f + b2f, 0.0)
        outs.append(h @ w3 + b3)

    return outs[0] if len(outs) == 1 else jnp.concatenate(outs, axis=0)


def init_params(key, n_features):
    """Deterministic init matching torch.nn.Linear default shapes.
    Weights stored as (in, out) so logical math is x @ W (== torch x @ W_t.T)."""
    def linear(key, fan_in, fan_out):
        k1, k2 = jax.random.split(key)
        bound = 1.0 / jnp.sqrt(float(fan_in))
        w = jax.random.uniform(k1, (fan_in, fan_out), jnp.float32, -bound, bound)
        b = jax.random.uniform(k2, (1, fan_out), jnp.float32, -bound, bound)
        return w, b

    k1, k2, k3 = jax.random.split(key, 3)
    w1, b1 = linear(k1, n_features, 8)
    w2, b2 = linear(k2, 8, 4)
    w3, b3 = linear(k3, 4, 1)
    return {
        "w1": w1, "b1": b1,
        "g1": jnp.ones((1, 8), jnp.float32), "be1": jnp.zeros((1, 8), jnp.float32),
        "m1": jnp.zeros((1, 8), jnp.float32), "v1": jnp.ones((1, 8), jnp.float32),
        "w2": w2, "b2": b2,
        "g2": jnp.ones((1, 4), jnp.float32), "be2": jnp.zeros((1, 4), jnp.float32),
        "m2": jnp.zeros((1, 4), jnp.float32), "v2": jnp.ones((1, 4), jnp.float32),
        "w3": w3, "b3": b3,
    }


def _reference(x, p):
    """Pure-JAX eval-mode reference with the UNfused BN math."""
    h = x @ p["w1"] + p["b1"]
    h = (h - p["m1"]) / jnp.sqrt(p["v1"] + BN_EPS) * p["g1"] + p["be1"]
    h = jnp.maximum(h, 0.0)
    h = h @ p["w2"] + p["b2"]
    h = (h - p["m2"]) / jnp.sqrt(p["v2"] + BN_EPS) * p["g2"] + p["be2"]
    h = jnp.maximum(h, 0.0)
    return h @ p["w3"] + p["b3"]


if __name__ == "__main__":
    key = jax.random.PRNGKey(0)
    k_x, k_p, k_x2 = jax.random.split(key, 3)

    batch, n_features = 8, 16
    x = jax.random.normal(k_x, (batch, n_features), jnp.float32)
    params = init_params(k_p, n_features)

    out = jax.block_until_ready(nn_forward(x, params))
    ref = _reference(x, params)
    assert out.shape == (batch, 1)
    assert jnp.allclose(out, ref, atol=1e-4, rtol=1e-4)

    # Exercise the gridded path: multiple tiles, ragged last block, tail rows.
    x2 = jax.random.normal(k_x2, (300, n_features), jnp.float32)
    out2 = jax.block_until_ready(nn_forward(x2, params, block_b=128))
    ref2 = _reference(x2, params)
    assert out2.shape == (300, 1)
    assert jnp.allclose(out2, ref2, atol=1e-4, rtol=1e-4)

    print("KERNEL_OK")
</pallas_src>

<mosaic_0001>
module attributes {stable_mosaic.version = 11 : i64} {
  func.func @_mlp_kernel(%arg0: i32, %arg1: memref<1x128xf32, #tpu.memory_space<vmem>>, %arg2: memref<128x64xf32, #tpu.memory_space<vmem>>, %arg3: memref<1x64xf32, #tpu.memory_space<vmem>>, %arg4: memref<64x32xf32, #tpu.memory_space<vmem>>, %arg5: memref<1x32xf32, #tpu.memory_space<vmem>>, %arg6: memref<32x8xf32, #tpu.memory_space<vmem>>, %arg7: memref<1x8xf32, #tpu.memory_space<vmem>>, %arg8: memref<1x8xf32, #tpu.memory_space<vmem>>) attributes {dimension_semantics = [#tpu.dimension_semantics<parallel>], iteration_bounds = array<i64: 1>, scalar_prefetch = 0 : i64, scratch_operands = 0 : i64, tpu.core_type = #tpu.core_type<tc>, window_params = [{transform_indices = @transform_0, window_bounds = array<i64: 1, 128>}, {pipeline_mode = #tpu.pipeline_mode<synchronous>, transform_indices = @transform_1, window_bounds = array<i64: 128, 64>}, {pipeline_mode = #tpu.pipeline_mode<synchronous>, transform_indices = @transform_2, window_bounds = array<i64: 1, 64>}, {pipeline_mode = #tpu.pipeline_mode<synchronous>, transform_indices = @transform_3, window_bounds = array<i64: 64, 32>}, {pipeline_mode = #tpu.pipeline_mode<synchronous>, transform_indices = @transform_4, window_bounds = array<i64: 1, 32>}, {pipeline_mode = #tpu.pipeline_mode<synchronous>, transform_indices = @transform_5, window_bounds = array<i64: 32, 8>}, {pipeline_mode = #tpu.pipeline_mode<synchronous>, transform_indices = @transform_6, window_bounds = array<i64: 1, 8>}, {transform_indices = @transform_7, window_bounds = array<i64: 1, 8>}]} {
    %c0 = arith.constant 0 : index
    %c0_0 = arith.constant 0 : index
    %0 = vector.load %arg1[%c0, %c0_0] : memref<1x128xf32, #tpu.memory_space<vmem>>, vector<1x128xf32>
    %c0_1 = arith.constant 0 : index
    %c0_2 = arith.constant 0 : index
    %1 = vector.load %arg2[%c0_1, %c0_2] : memref<128x64xf32, #tpu.memory_space<vmem>>, vector<128x64xf32>
    %cst = arith.constant dense<0.000000e+00> : vector<1x64xf32>
    %2 = tpu.matmul %0, %1, %cst {dimension_numbers = #tpu.dot_dimension_numbers<[1], [0], [0], [1], [0, 0, 1, 1], [], []>} : vector<1x128xf32>, vector<128x64xf32>, vector<1x64xf32> -> vector<1x64xf32>
    %c0_3 = arith.constant 0 : index
    %c0_4 = arith.constant 0 : index
    %3 = vector.load %arg3[%c0_3, %c0_4] : memref<1x64xf32, #tpu.memory_space<vmem>>, vector<1x64xf32>
    %4 = arith.addf %2, %3 : vector<1x64xf32>
    %cst_5 = arith.constant 0.000000e+00 : f32
    %5 = vector.broadcast %cst_5 : f32 to vector<1x64xf32>
    %6 = arith.maximumf %4, %5 : vector<1x64xf32>
    %c0_6 = arith.constant 0 : index
    %c0_7 = arith.constant 0 : index
    %7 = vector.load %arg4[%c0_6, %c0_7] : memref<64x32xf32, #tpu.memory_space<vmem>>, vector<64x32xf32>
    %cst_8 = arith.constant dense<0.000000e+00> : vector<1x32xf32>
    %8 = tpu.matmul %6, %7, %cst_8 {dimension_numbers = #tpu.dot_dimension_numbers<[1], [0], [0], [1], [0, 0, 1, 1], [], []>} : vector<1x64xf32>, vector<64x32xf32>, vector<1x32xf32> -> vector<1x32xf32>
    %c0_9 = arith.constant 0 : index
    %c0_10 = arith.constant 0 : index
    %9 = vector.load %arg5[%c0_9, %c0_10] : memref<1x32xf32, #tpu.memory_space<vmem>>, vector<1x32xf32>
    %10 = arith.addf %8, %9 : vector<1x32xf32>
    %cst_11 = arith.constant 0.000000e+00 : f32
    %11 = vector.broadcast %cst_11 : f32 to vector<1x32xf32>
    %12 = arith.maximumf %10, %11 : vector<1x32xf32>
    %c0_12 = arith.constant 0 : index
    %c0_13 = arith.constant 0 : index
    %13 = vector.load %arg6[%c0_12, %c0_13] : memref<32x8xf32, #tpu.memory_space<vmem>>, vector<32x8xf32>
    %cst_14 = arith.constant dense<0.000000e+00> : vector<1x8xf32>
    %14 = tpu.matmul %12, %13, %cst_14 {dimension_numbers = #tpu.dot_dimension_numbers<[1], [0], [0], [1], [0, 0, 1, 1], [], []>} : vector<1x32xf32>, vector<32x8xf32>, vector<1x8xf32> -> vector<1x8xf32>
    %c0_15 = arith.constant 0 : index
    %c0_16 = arith.constant 0 : index
    %15 = vector.load %arg7[%c0_15, %c0_16] : memref<1x8xf32, #tpu.memory_space<vmem>>, vector<1x8xf32>
    %16 = arith.addf %14, %15 : vector<1x8xf32>
    %c0_17 = arith.constant 0 : index
    %c0_18 = arith.constant 0 : index
    %17 = vector.load %arg8[%c0_17, %c0_18] : memref<1x8xf32, #tpu.memory_space<vmem>>, vector<1x8xf32>
    tpu.vector_store %arg8[%c0_17, %c0_18], %16 {strides = array<i32>} : memref<1x8xf32, #tpu.memory_space<vmem>>, vector<1x8xf32>,
    return
  }
  func.func @transform_0(%arg0: i32) -> (i32, i32) {
    %c0_i32 = arith.constant 0 : i32
    %c0_i32_0 = arith.constant 0 : i32
    return %arg0, %c0_i32 : i32, i32
  }
  func.func @transform_1(%arg0: i32) -> (i32, i32) {
    %c0_i32 = arith.constant 0 : i32
    %c0_i32_0 = arith.constant 0 : i32
    %c0_i32_1 = arith.constant 0 : i32
    return %c0_i32, %c0_i32_0 : i32, i32
  }
  func.func @transform_2(%arg0: i32) -> (i32, i32) {
    %c0_i32 = arith.constant 0 : i32
    %c0_i32_0 = arith.constant 0 : i32
    %c0_i32_1 = arith.constant 0 : i32
    return %c0_i32, %c0_i32_0 : i32, i32
  }
  func.func @transform_3(%arg0: i32) -> (i32, i32) {
    %c0_i32 = arith.constant 0 : i32
    %c0_i32_0 = arith.constant 0 : i32
    %c0_i32_1 = arith.constant 0 : i32
    return %c0_i32, %c0_i32_0 : i32, i32
  }
  func.func @transform_4(%arg0: i32) -> (i32, i32) {
    %c0_i32 = arith.constant 0 : i32
    %c0_i32_0 = arith.constant 0 : i32
    %c0_i32_1 = arith.constant 0 : i32
    return %c0_i32, %c0_i32_0 : i32, i32
  }
  func.func @transform_5(%arg0: i32) -> (i32, i32) {
    %c0_i32 = arith.constant 0 : i32
    %c0_i32_0 = arith.constant 0 : i32
    %c0_i32_1 = arith.constant 0 : i32
    return %c0_i32, %c0_i32_0 : i32, i32
  }
  func.func @transform_6(%arg0: i32) -> (i32, i32) {
    %c0_i32 = arith.constant 0 : i32
    %c0_i32_0 = arith.constant 0 : i32
    %c0_i32_1 = arith.constant 0 : i32
    return %c0_i32, %c0_i32_0 : i32, i32
  }
  func.func @transform_7(%arg0: i32) -> (i32, i32) {
    %c0_i32 = arith.constant 0 : i32
    %c0_i32_0 = arith.constant 0 : i32
    return %arg0, %c0_i32 : i32, i32
  }
}

</mosaic_0001>

<llo_original>
// kernel: tpu_custom_call.1
$region0: #{tpu_custom_call.1}
  #allocation0 [shape = 'u32[]', space=smem, size = 0x4, offset = 0x4, fixed_abs, tag = 'smem constant byte address 0x4 - core index']
  #allocation1 [shape = 'u32[144,128]{1,0:T(1,128)}', space=vmem, size = 0x12000, scoped, tag = 'internal scratch']
  %s0 = inlined_call_operand.vmem [shape: f32[1,128], index: 0, kind: input, shape index: {}]
  %s1 = inlined_call_operand.vmem [shape: f32[128,64], index: 1, kind: input, shape index: {}]
  %s2 = inlined_call_operand.vmem [shape: f32[1,64], index: 2, kind: input, shape index: {}]
  %s3 = inlined_call_operand.vmem [shape: f32[64,32], index: 3, kind: input, shape index: {}]
  %s4 = inlined_call_operand.vmem [shape: f32[1,32], index: 4, kind: input, shape index: {}]
  %s5 = inlined_call_operand.vmem [shape: f32[32,8], index: 5, kind: input, shape index: {}]
  %s6 = inlined_call_operand.vmem [shape: f32[1,8], index: 6, kind: input, shape index: {}]
  %s7 = inlined_call_operand.hbm [shape: f32[1,8], index: 7, kind: output, shape index: {}]
  %s8 = sld [smem:[#allocation0]]
  $region38: #{tpu_custom_call.1} parent=0
    _
  %s10 = ssub.s32 1, %s8
  %s11 = scalar_select 0, %s10, %s8
  $region1: #{tpu_custom_call.1} parent=0
    #allocation2 [shape = 'u8[512]{0}', space=vmem, size = 0x400, scoped, tag = 'output window, operand 0, single buffered']
    #allocation3 [shape = 's32[1]{0}', space=sflag, size = 0x4, scoped, tag = 'scoped memory for tpu_custom_call.1']
    %12 = vsyncpa [#allocation3], 0
    // Predicated region
    $region2: #{tpu_custom_call.1} parent=1 // pred_check
      _
    $region3: #{tpu_custom_call.1} parent=1 // pred_check_branch
      %14 = sbr.rel (0) target = $region5
    $region4: #{tpu_custom_call.1} parent=1 // pred_region
      _
    $region5: #{tpu_custom_call.1} parent=1 // pred_fallthru
      _
    // Predicated region
    $region6: #{tpu_custom_call.1} parent=1 // pred_check
      _
    $region7: #{tpu_custom_call.1} parent=1 // pred_check_branch
      %16 = sbr.rel (0) target = $region9
    $region8: #{tpu_custom_call.1} parent=1 // pred_region
      _
    $region9: #{tpu_custom_call.1} parent=1 // pred_fallthru
      _
    // Predicated region
    $region10: #{tpu_custom_call.1} parent=1 // pred_check
      _
    $region11: #{tpu_custom_call.1} parent=1 // pred_check_branch
      %18 = sbr.rel (0) target = $region13
    $region12: #{tpu_custom_call.1} parent=1 // pred_region
      _
    $region13: #{tpu_custom_call.1} parent=1 // pred_fallthru
      _
    // Predicated region
    $region14: #{tpu_custom_call.1} parent=1 // pred_check
      _
    $region15: #{tpu_custom_call.1} parent=1 // pred_check_branch
      %20 = sbr.rel (0) target = $region17
    $region16: #{tpu_custom_call.1} parent=1 // pred_region
      _
    $region17: #{tpu_custom_call.1} parent=1 // pred_fallthru
      _
    // Predicated region
    $region18: #{tpu_custom_call.1} parent=1 // pred_check
      _
    $region19: #{tpu_custom_call.1} parent=1 // pred_check_branch
      %22 = sbr.rel (0) target = $region21
    $region20: #{tpu_custom_call.1} parent=1 // pred_region
      _
    $region21: #{tpu_custom_call.1} parent=1 // pred_fallthru
      _
    // Predicated region
    $region22: #{tpu_custom_call.1} parent=1 // pred_check
      _
    $region23: #{tpu_custom_call.1} parent=1 // pred_check_branch
      %24 = sbr.rel (0) target = $region25
    $region24: #{tpu_custom_call.1} parent=1 // pred_region
      _
    $region25: #{tpu_custom_call.1} parent=1 // pred_fallthru
      _
    // Predicated region
    $region26: #{tpu_custom_call.1} parent=1 // pred_check
      _
    $region27: #{tpu_custom_call.1} parent=1 // pred_check_branch
      %26 = sbr.rel (0) target = $region29
    $region28: #{tpu_custom_call.1} parent=1 // pred_region
      _
    $region29: #{tpu_custom_call.1} parent=1 // pred_fallthru
      _
    %v27 = vld [vmem:[%s0] sm:$0x1]
    %v28 = vld [vmem:[%s1] sm:$0xff]
    %v29 = vld [vmem:[%s1 + $0x8] sm:$0xff]
    %v30 = vld [vmem:[%s1 + $0x10] sm:$0xff]
    %v31 = vld [vmem:[%s1 + $0x18] sm:$0xff]
    %v32 = vld [vmem:[%s1 + $0x20] sm:$0xff]
    %v33 = vld [vmem:[%s1 + $0x28] sm:$0xff]
    %v34 = vld [vmem:[%s1 + $0x30] sm:$0xff]
    %v35 = vld [vmem:[%s1 + $0x38] sm:$0xff]
    %v36 = vld [vmem:[%s1 + $0x40] sm:$0xff]
    %v37 = vld [vmem:[%s1 + $0x48] sm:$0xff]
    %v38 = vld [vmem:[%s1 + $0x50] sm:$0xff]
    %v39 = vld [vmem:[%s1 + $0x58] sm:$0xff]
    %v40 = vld [vmem:[%s1 + $0x60] sm:$0xff]
    %v41 = vld [vmem:[%s1 + $0x68] sm:$0xff]
    %v42 = vld [vmem:[%s1 + $0x70] sm:$0xff]
    %v43 = vld [vmem:[%s1 + $0x78] sm:$0xff]
    %v44 = vld [vmem:[%s2] sm:$0x1]
    %45 = vmatprep.subr.mxu0 0.0
    %46 = vmatpush1.msra.mxu0 %v28
    %47 = vmatprep.subr.mxu0 0.0
    %48 = vmatpush1.msra.mxu0 %v29
    %49 = vmatprep.subr.mxu0 0.0
    %50 = vmatpush1.msra.mxu0 %v30
    %51 = vmatprep.subr.mxu0 0.0
    %52 = vmatpush1.msra.mxu0 %v31
    %53 = vmatprep.subr.mxu0 0.0
    %54 = vmatpush1.msra.mxu0 %v32
    %55 = vmatprep.subr.mxu0 0.0
    %56 = vmatpush1.msra.mxu0 %v33
    %57 = vmatprep.subr.mxu0 0.0
    %58 = vmatpush1.msra.mxu0 %v34
    %59 = vmatprep.subr.mxu0 0.0
    %60 = vmatpush1.msra.mxu0 %v35
    %61 = vmatprep.subr.mxu0 0.0
    %62 = vmatpush1.msra.mxu0 %v36
    %63 = vmatprep.subr.mxu0 0.0
    %64 = vmatpush1.msra.mxu0 %v37
    %65 = vmatprep.subr.mxu0 0.0
    %66 = vmatpush1.msra.mxu0 %v38
    %67 = vmatprep.subr.mxu0 0.0
    %68 = vmatpush1.msra.mxu0 %v39
    %69 = vmatprep.subr.mxu0 0.0
    %70 = vmatpush1.msra.mxu0 %v40
    %71 = vmatprep.subr.mxu0 0.0
    %72 = vmatpush1.msra.mxu0 %v41
    %73 = vmatprep.subr.mxu0 0.0
    %74 = vmatpush1.msra.mxu0 %v42
    %75 = vmatprep.subr.mxu0 0.0
    %76 = vmatpush1.msra.mxu0 %v43
    %77 = vmatprep.subr.mxu0 0.0
    %78 = vmatpush1.msra.mxu0 0.0
    %79 = vmatprep.subr.mxu0 0.0
    %80 = vmatpush1.msra.mxu0 0.0
    %81 = vmatprep.subr.mxu0 0.0
    %82 = vmatpush1.msra.mxu0 0.0
    %83 = vmatprep.subr.mxu0 0.0
    %84 = vmatpush1.msra.mxu0 0.0
    %85 = vmatprep.subr.mxu0 0.0
    %86 = vmatpush1.msra.mxu0 0.0
    %87 = vmatprep.subr.mxu0 0.0
    %88 = vmatpush1.msra.mxu0 0.0
    %89 = vmatprep.subr.mxu0 0.0
    %90 = vmatpush1.msra.mxu0 0.0
    %91 = vmatprep.subr.mxu0 0.0
    %92 = vmatpush1.msra.mxu0 0.0
    %93 = vmatprep.subr.mxu0 0.0
    %94 = vmatpush1.msra.mxu0 0.0
    %95 = vmatprep.subr.mxu0 0.0
    %96 = vmatpush1.msra.mxu0 0.0
    %97 = vmatprep.subr.mxu0 0.0
    %98 = vmatpush1.msra.mxu0 0.0
    %99 = vmatprep.subr.mxu0 0.0
    %100 = vmatpush1.msra.mxu0 0.0
    %101 = vmatprep.subr.mxu0 0.0
    %102 = vmatpush1.msra.mxu0 0.0
    %103 = vmatprep.subr.mxu0 0.0
    %104 = vmatpush1.msra.mxu0 0.0
    %105 = vmatprep.subr.mxu0 0.0
    %106 = vmatpush1.msra.mxu0 0.0
    %107 = vmatprep.subr.mxu0 0.0
    %108 = vmatpush1.msra.mxu0 0.0
    %109 = vmatprep.mubr.f32.mxu0 0.0
    %110 = vmatmul.mubr.f32.gmra.mrb[0].mxu0 %v27
    %v111 = vpop.f32.mrb[0].mxu0
    %v112 = vadd.f32 %v44, %v111
    %v113 = vpop.f32.mrb[0].mxu0
    %114 = vdwg.mxu0
    %v115 = vmax.f32 %v112, 0.0
    %v116 = vld [vmem:[%s3] sm:$0xff]
    %v117 = vld [vmem:[%s3 + $0x8] sm:$0xff]
    %v118 = vld [vmem:[%s3 + $0x10] sm:$0xff]
    %v119 = vld [vmem:[%s3 + $0x18] sm:$0xff]
    %v120 = vld [vmem:[%s3 + $0x20] sm:$0xff]
    %v121 = vld [vmem:[%s3 + $0x28] sm:$0xff]
    %v122 = vld [vmem:[%s3 + $0x30] sm:$0xff]
    %v123 = vld [vmem:[%s3 + $0x38] sm:$0xff]
    %v124 = vld [vmem:[%s4] sm:$0x1]
    %vm125 = vcmask 523264
    %v127 = vsel %vm125, %v115, 0
    %129 = vmatprep.subr.mxu0 0.0
    %130 = vmatpush1.msra.mxu0 %v116
    %131 = vmatprep.subr.mxu0 0.0
    %132 = vmatpush1.msra.mxu0 %v117
    %133 = vmatprep.subr.mxu0 0.0
    %134 = vmatpush1.msra.mxu0 %v118
    %135 = vmatprep.subr.mxu0 0.0
    %136 = vmatpush1.msra.mxu0 %v119
    %137 = vmatprep.subr.mxu0 0.0
    %138 = vmatpush1.msra.mxu0 %v120
    %139 = vmatprep.subr.mxu0 0.0
    %140 = vmatpush1.msra.mxu0 %v121
    %141 = vmatprep.subr.mxu0 0.0
    %142 = vmatpush1.msra.mxu0 %v122
    %143 = vmatprep.subr.mxu0 0.0
    %144 = vmatpush1.msra.mxu0 %v123
    %145 = vmatprep.subr.mxu0 0.0
    %146 = vmatpush1.msra.mxu0 0.0
    %147 = vmatprep.subr.mxu0 0.0
    %148 = vmatpush1.msra.mxu0 0.0
    %149 = vmatprep.subr.mxu0 0.0
    %150 = vmatpush1.msra.mxu0 0.0
    %151 = vmatprep.subr.mxu0 0.0
    %152 = vmatpush1.msra.mxu0 0.0
    %153 = vmatprep.subr.mxu0 0.0
    %154 = vmatpush1.msra.mxu0 0.0
    %155 = vmatprep.subr.mxu0 0.0
    %156 = vmatpush1.msra.mxu0 0.0
    %157 = vmatprep.subr.mxu0 0.0
    %158 = vmatpush1.msra.mxu0 0.0
    %159 = vmatprep.subr.mxu0 0.0
    %160 = vmatpush1.msra.mxu0 0.0
    %161 = vmatprep.subr.mxu0 0.0
    %162 = vmatpush1.msra.mxu0 0.0
    %163 = vmatprep.subr.mxu0 0.0
    %164 = vmatpush1.msra.mxu0 0.0
    %165 = vmatprep.subr.mxu0 0.0
    %166 = vmatpush1.msra.mxu0 0.0
    %167 = vmatprep.subr.mxu0 0.0
    %168 = vmatpush1.msra.mxu0 0.0
    %169 = vmatprep.subr.mxu0 0.0
    %170 = vmatpush1.msra.mxu0 0.0
    %171 = vmatprep.subr.mxu0 0.0
    %172 = vmatpush1.msra.mxu0 0.0
    %173 = vmatprep.subr.mxu0 0.0
    %174 = vmatpush1.msra.mxu0 0.0
    %175 = vmatprep.subr.mxu0 0.0
    %176 = vmatpush1.msra.mxu0 0.0
    %177 = vmatprep.subr.mxu0 0.0
    %178 = vmatpush1.msra.mxu0 0.0
    %179 = vmatprep.subr.mxu0 0.0
    %180 = vmatpush1.msra.mxu0 0.0
    %181 = vmatprep.subr.mxu0 0.0
    %182 = vmatpush1.msra.mxu0 0.0
    %183 = vmatprep.subr.mxu0 0.0
    %184 = vmatpush1.msra.mxu0 0.0
    %185 = vmatprep.subr.mxu0 0.0
    %186 = vmatpush1.msra.mxu0 0.0
    %187 = vmatprep.subr.mxu0 0.0
    %188 = vmatpush1.msra.mxu0 0.0
    %189 = vmatprep.subr.mxu0 0.0
    %190 = vmatpush1.msra.mxu0 0.0
    %191 = vmatprep.subr.mxu0 0.0
    %192 = vmatpush1.msra.mxu0 0.0
    %193 = vmatprep.mubr.f32.mxu0 0.0
    %194 = vmatmul.mubr.f32.gmra.mrb[0].mxu0 %v127
    %v195 = vpop.f32.mrb[0].mxu0
    %v196 = vadd.f32 %v124, %v195
    %v197 = vpop.f32.mrb[0].mxu0
    %198 = vdwg.mxu0
    %v199 = vmax.f32 %v196, 0.0
    %v200 = vld [vmem:[%s5] sm:$0xff]
    %v201 = vld [vmem:[%s5 + $0x8] sm:$0xff]
    %v202 = vld [vmem:[%s5 + $0x10] sm:$0xff]
    %v203 = vld [vmem:[%s5 + $0x18] sm:$0xff]
    %v204 = vld [vmem:[%s6] sm:$0x1]
    %vm205 = vcmask 261120
    %v207 = vsel %vm205, %v199, 0
    %209 = vmatprep.subr.mxu0 0.0
    %210 = vmatpush1.msra.mxu0 %v200
    %211 = vmatprep.subr.mxu0 0.0
    %212 = vmatpush1.msra.mxu0 %v201
    %213 = vmatprep.subr.mxu0 0.0
    %214 = vmatpush1.msra.mxu0 %v202
    %215 = vmatprep.subr.mxu0 0.0
    %216 = vmatpush1.msra.mxu0 %v203
    %217 = vmatprep.subr.mxu0 0.0
    %218 = vmatpush1.msra.mxu0 0.0
    %219 = vmatprep.subr.mxu0 0.0
    %220 = vmatpush1.msra.mxu0 0.0
    %221 = vmatprep.subr.mxu0 0.0
    %222 = vmatpush1.msra.mxu0 0.0
    %223 = vmatprep.subr.mxu0 0.0
    %224 = vmatpush1.msra.mxu0 0.0
    %225 = vmatprep.subr.mxu0 0.0
    %226 = vmatpush1.msra.mxu0 0.0
    %227 = vmatprep.subr.mxu0 0.0
    %228 = vmatpush1.msra.mxu0 0.0
    %229 = vmatprep.subr.mxu0 0.0
    %230 = vmatpush1.msra.mxu0 0.0
    %231 = vmatprep.subr.mxu0 0.0
    %232 = vmatpush1.msra.mxu0 0.0
    %233 = vmatprep.subr.mxu0 0.0
    %234 = vmatpush1.msra.mxu0 0.0
    %235 = vmatprep.subr.mxu0 0.0
    %236 = vmatpush1.msra.mxu0 0.0
    %237 = vmatprep.subr.mxu0 0.0
    %238 = vmatpush1.msra.mxu0 0.0
    %239 = vmatprep.subr.mxu0 0.0
    %240 = vmatpush1.msra.mxu0 0.0
    %241 = vmatprep.subr.mxu0 0.0
    %242 = vmatpush1.msra.mxu0 0.0
    %243 = vmatprep.subr.mxu0 0.0
    %244 = vmatpush1.msra.mxu0 0.0
    %245 = vmatprep.subr.mxu0 0.0
    %246 = vmatpush1.msra.mxu0 0.0
    %247 = vmatprep.subr.mxu0 0.0
    %248 = vmatpush1.msra.mxu0 0.0
    %249 = vmatprep.subr.mxu0 0.0
    %250 = vmatpush1.msra.mxu0 0.0
    %251 = vmatprep.subr.mxu0 0.0
    %252 = vmatpush1.msra.mxu0 0.0
    %253 = vmatprep.subr.mxu0 0.0
    %254 = vmatpush1.msra.mxu0 0.0
    %255 = vmatprep.subr.mxu0 0.0
    %256 = vmatpush1.msra.mxu0 0.0
    %257 = vmatprep.subr.mxu0 0.0
    %258 = vmatpush1.msra.mxu0 0.0
    %259 = vmatprep.subr.mxu0 0.0
    %260 = vmatpush1.msra.mxu0 0.0
    %261 = vmatprep.subr.mxu0 0.0
    %262 = vmatpush1.msra.mxu0 0.0
    %263 = vmatprep.subr.mxu0 0.0
    %264 = vmatpush1.msra.mxu0 0.0
    %265 = vmatprep.subr.mxu0 0.0
    %266 = vmatpush1.msra.mxu0 0.0
    %267 = vmatprep.subr.mxu0 0.0
    %268 = vmatpush1.msra.mxu0 0.0
    %269 = vmatprep.subr.mxu0 0.0
    %270 = vmatpush1.msra.mxu0 0.0
    %271 = vmatprep.subr.mxu0 0.0
    %272 = vmatpush1.msra.mxu0 0.0
    %273 = vmatprep.mubr.f32.mxu0 0.0
    %274 = vmatmul.mubr.f32.gmra.mrb[0].mxu0 %v207
    %v275 = vpop.f32.mrb[0].mxu0
    %v276 = vadd.f32 %v204, %v275
    %v277 = vpop.f32.mrb[0].mxu0
    %278 = vdwg.mxu0
    %vm279 = vcmask 57344
    %280 = vst.msk [vmem:[#allocation2] sm:$0x1] %vm279, %v276
    // Predicated region
    $region30: #{tpu_custom_call.1} parent=1 // pred_check
      _
    $region31: #{tpu_custom_call.1} parent=1 // pred_check_branch
      %282 = sbr.rel (0) target = $region33
    $region32: #{tpu_custom_call.1} parent=1 // pred_region
      %s284 = ssub.s32 16, 16
      %285 = vsyncadd [#allocation3], %s284
      %s287 = sshll.u32 [#allocation2], 4
      %s288 = int_to_ptr.vmem [resolvable:$true] %s287
      %290 = dma.vmem_to_hbm [thread:$0]  %s288, 16, %s7, [#allocation3]
    $region33: #{tpu_custom_call.1} parent=1 // pred_fallthru
      _
    // Predicated region
    $region34: #{tpu_custom_call.1} parent=1 // pred_check
      _
    $region35: #{tpu_custom_call.1} parent=1 // pred_check_branch
      %292 = sbr.rel (0) target = $region37
    $region36: #{tpu_custom_call.1} parent=1 // pred_region
      %293 = dma.done [#allocation3], 16
    $region37: #{tpu_custom_call.1} parent=1 // pred_fallthru
      _
    %294 = vsyncpa [#allocation3], 1

</llo_original>
